<compile_context>
chip_gen: v5e
topology: v5e:2x2
jax: 0.10.0
libtpu: 0.0.40
codegen_flags: <defaults>
</compile_context>

<pallas_src>
import math

import jax
import jax.numpy as jnp
from jax import lax
from jax.experimental import pallas as pl
from jax.experimental.pallas import tpu as pltpu

# ------------------------- model dimensions (small, synthetic) -------------------------
B = 2            # batch
S = 8            # sequence length
H = 32           # ts_model hidden size (ts_model_hs)
F = 64           # FFN intermediate size of the stand-in encoder
L = 4            # num_labels
BS = B * S

S_LOG2 = 3
assert S == (1 << S_LOG2)

# ---- bf16 matrix slab layout ((MAT_ROWS, 128)); only true MXU operands remain ----
MR_FF1 = 0                 # (H, F)
MR_FF2 = MR_FF1 + H        # (F, H)
MR_D   = MR_FF2 + F        # (H, H)
MR_C   = MR_D + H          # (H, L)
MAT_ROWS = MR_C + H        # 160 rows (all offsets multiples of 16 for bf16 packing)

# ---- f32 vector slab layout ((VEC_ROWS, 128)); one parameter row each ----
VR_EMB_W, VR_EMB_B = 0, 1          # embedding_projection (kept for the residual)
VR_QKV_W, VR_QKV_B = 2, 3          # emb- and W_o-folded fused QKV row (1, 3H)
VR_O_B = 4                          # effective attention output bias
VR_LN1G, VR_LN1B = 5, 6
VR_FF1_B, VR_FF2_B = 7, 8
VR_LN2G, VR_LN2B = 9, 10
VR_LM_W, VR_LM_B = 11, 12
VR_D_B, VR_C_B = 13, 14
VEC_ROWS = 16

_GELU_C = math.sqrt(2.0 / math.pi)


def _new_gelu(u):
    # NewGELUActivation (tanh approximation) — identical to the PyTorch module.
    return 0.5 * u * (1.0 + jnp.tanh(_GELU_C * (u + 0.044715 * (u * u * u))))


def _layer_norm(h, g, b, eps=1e-5):
    # h: (BS, H); g/b: (1, H)
    mean = jnp.mean(h, axis=-1, keepdims=True)
    var = jnp.mean((h - mean) ** 2, axis=-1, keepdims=True)
    return (h - mean) * lax.rsqrt(var + eps) * g + b


def _bf(x):
    return x.astype(jnp.bfloat16)


def ts_kernel(x_ref, sig_ref, attn_ref, cy_ref, mat_ref, vec_ref, out_ref):
    x_col = x_ref[...]            # (BS, 1) f32
    sig_col = sig_ref[...]        # (BS, 1) f32
    attn_row = attn_ref[...]      # (1, BS) f32 — single source for both masks

    # ---- embedding_projection (residual path only; pure VPU) ----
    w_emb = vec_ref[VR_EMB_W:VR_EMB_W + 1, 0:H]
    b_emb = vec_ref[VR_EMB_B:VR_EMB_B + 1, 0:H]
    emb = x_col * w_emb + b_emb                                   # (BS, H) f32

    # ---- fused (x -> Q|K|V') projection; W_o pre-folded into V' host-side ----
    qkv_w = vec_ref[VR_QKV_W:VR_QKV_W + 1, 0:3 * H]
    qkv_b = vec_ref[VR_QKV_B:VR_QKV_B + 1, 0:3 * H]
    qkv = x_col * qkv_w + qkv_b                                   # (BS, 3H) f32, no MXU
    q = qkv[:, 0:H]
    k = qkv[:, H:2 * H]
    v = qkv[:, 2 * H:3 * H]                                       # = emb @ (W_v @ W_o)

    # ---- block-diagonal single-head self-attention over all B*S rows ----
    scale = 1.0 / math.sqrt(H)
    scores = lax.dot_general(_bf(q), _bf(k), (((1,), (1,)), ((), ())),
                             preferred_element_type=jnp.float32) * scale   # (BS, BS)
    row_i = lax.broadcasted_iota(jnp.int32, (BS, BS), 0)
    col_i = lax.broadcasted_iota(jnp.int32, (BS, BS), 1)
    same_block = (row_i >> S_LOG2) == (col_i >> S_LOG2)           # same batch element
    key_ok = attn_row > 0.5                                       # (1, BS) key padding
    valid = jnp.logical_and(same_block, key_ok)
    scores = jnp.where(valid, scores, -1e9)                       # mask in f32
    m = jnp.max(scores, axis=-1, keepdims=True)
    e = jnp.exp(scores - m)
    denom = jnp.sum(e, axis=-1, keepdims=True)
    p = e * pl.reciprocal(denom, approx=True)                     # EUP reciprocal

    b_o = vec_ref[VR_O_B:VR_O_B + 1, 0:H]
    attn_out = jnp.dot(_bf(p), _bf(v), preferred_element_type=jnp.float32) + b_o

    h1 = _layer_norm(emb + attn_out,
                     vec_ref[VR_LN1G:VR_LN1G + 1, 0:H],
                     vec_ref[VR_LN1B:VR_LN1B + 1, 0:H])

    # ---- GELU FFN ----
    w1 = mat_ref[MR_FF1:MR_FF1 + H, 0:F]                          # bf16
    b1 = vec_ref[VR_FF1_B:VR_FF1_B + 1, 0:F]
    w2 = mat_ref[MR_FF2:MR_FF2 + F, 0:H]
    b2 = vec_ref[VR_FF2_B:VR_FF2_B + 1, 0:H]
    ffn = _new_gelu(jnp.dot(_bf(h1), w1, preferred_element_type=jnp.float32) + b1)
    ffn = jnp.dot(_bf(ffn), w2, preferred_element_type=jnp.float32) + b2
    hidden = _layer_norm(h1 + ffn,
                         vec_ref[VR_LN2G:VR_LN2G + 1, 0:H],
                         vec_ref[VR_LN2B:VR_LN2B + 1, 0:H])       # (BS, H)

    # ---- ts_model "MLM" loss: masked MSE regression vs signal_y ----
    w_lm = vec_ref[VR_LM_W:VR_LM_W + 1, 0:H]
    b_lm = vec_ref[VR_LM_B:VR_LM_B + 1, 0:1]
    preds = jnp.sum(hidden * w_lm, axis=-1, keepdims=True) + b_lm  # (BS, 1)
    diff = preds - sig_col
    diffsq = diff * diff                                           # (BS, 1)
    # masked reduce with the attention row via a diagonal select (no transpose needed)
    eye = row_i == col_i
    mlm_num = jnp.sum(jnp.where(eye, diffsq * attn_row, 0.0), keepdims=True)   # (1,1)
    mlm_den = jnp.maximum(jnp.sum(attn_row, keepdims=True), 1.0)               # (1,1)
    mlm_loss = mlm_num * pl.reciprocal(mlm_den, approx=True)

    # ---- classification head (dropout -> identity in inference) ----
    w_d = mat_ref[MR_D:MR_D + H, 0:H]
    b_d = vec_ref[VR_D_B:VR_D_B + 1, 0:H]
    w_c = mat_ref[MR_C:MR_C + H, 0:L]
    b_c = vec_ref[VR_C_B:VR_C_B + 1, 0:L]
    dense = _new_gelu(jnp.dot(_bf(hidden), w_d,
                              preferred_element_type=jnp.float32) + b_d)
    logits_all = jnp.dot(_bf(dense), w_c,
                         preferred_element_type=jnp.float32) + b_c  # (BS, L)

    # ---- gather the two CLS rows (0 and S) into one (B, L) block (B == 2) ----
    r0 = logits_all[0:1, :]
    r1 = logits_all[S:S + 1, :]
    rsel = lax.broadcasted_iota(jnp.int32, (B, L), 0)
    cls = jnp.where(rsel == 0, r0, r1)                             # (B, L) f32

    # ---- vectorized CrossEntropyLoss (mean over batch) ----
    col_bl = lax.broadcasted_iota(jnp.int32, (B, L), 1)
    labels = jnp.where(rsel == 0, cy_ref[0], cy_ref[1])            # (B, L) int32
    onehot = col_bl == labels
    mx = jnp.max(cls, axis=-1, keepdims=True)
    lse = mx + jnp.log(jnp.sum(jnp.exp(cls - mx), axis=-1, keepdims=True))
    true_logit = jnp.sum(jnp.where(onehot, cls, 0.0), axis=-1, keepdims=True)
    ce_loss = jnp.sum(lse - true_logit, keepdims=True) * (1.0 / B)  # (1,1)

    # ---- single lane-padded output: logits in rows 0..B-1, loss at [B, 0] ----
    out_ref[...] = jnp.zeros((8, 128), jnp.float32)
    out_ref[0:B, 0:L] = cls
    out_ref[B:B + 1, 0:1] = mlm_loss + ce_loss


@jax.jit
def time_series_model_forward(x, signal_y, attention, class_y, mat_slab, vec_slab):
    # tiny direct inputs (no wrapper-side concat / packing)
    x_col = x.reshape(BS, 1).astype(jnp.float32)
    sig_col = signal_y.reshape(BS, 1).astype(jnp.float32)
    attn_row = attention.reshape(1, BS).astype(jnp.float32)
    cy = class_y.reshape(B).astype(jnp.int32)                      # -> SMEM scalars

    vmem = pl.BlockSpec(memory_space=pltpu.MemorySpace.VMEM)
    smem = pl.BlockSpec(memory_space=pltpu.MemorySpace.SMEM)

    out = pl.pallas_call(
        ts_kernel,
        in_specs=[vmem, vmem, vmem, smem, vmem, vmem],
        out_specs=pl.BlockSpec(memory_space=pltpu.MemorySpace.VMEM),
        out_shape=jax.ShapeDtypeStruct((8, 128), jnp.float32),
    )(x_col, sig_col, attn_row, cy, mat_slab, vec_slab)

    logits = out[0:B, 0:L]
    loss = out[B, 0]
    return logits, loss


def init_params(key):
    """Create raw parameters, do the exact f32 host-side folds, pack into two slabs."""
    keys = jax.random.split(key, 10)
    std = 0.02

    def nrm(k, shape):
        return jax.random.normal(k, shape, dtype=jnp.float32) * std

    w_emb = nrm(keys[0], (1, H)); b_emb = jnp.zeros((1, H), jnp.float32)
    w_q = nrm(keys[1], (H, H)); w_k = nrm(keys[2], (H, H)); w_v = nrm(keys[3], (H, H))
    b_q = jnp.zeros((1, H), jnp.float32)
    b_k = jnp.zeros((1, H), jnp.float32)
    b_v = jnp.zeros((1, H), jnp.float32)
    w_o = nrm(keys[4], (H, H)); b_o = jnp.zeros((1, H), jnp.float32)
    ln1g = jnp.ones((1, H), jnp.float32); ln1b = jnp.zeros((1, H), jnp.float32)
    w1 = nrm(keys[5], (H, F)); b1 = jnp.zeros((1, F), jnp.float32)
    w2 = nrm(keys[6], (F, H)); b2 = jnp.zeros((1, H), jnp.float32)
    ln2g = jnp.ones((1, H), jnp.float32); ln2b = jnp.zeros((1, H), jnp.float32)
    w_lm = nrm(keys[7], (1, H)); b_lm = jnp.zeros((1, 1), jnp.float32)
    w_d = nrm(keys[8], (H, H)); b_d = jnp.zeros((1, H), jnp.float32)
    w_c = nrm(keys[9], (H, L)); b_c = jnp.zeros((1, L), jnp.float32)

    # ---- exact host-side folds (all in f32) ----
    w_vo = w_v @ w_o                                         # fold W_o into W_v
    w_qkv = jnp.concatenate([w_q, w_k, w_vo], axis=1)        # (H, 3H)
    qkv_w_row = w_emb @ w_qkv                                # fold embedding weight  (1, 3H)
    qkv_b_row = b_emb @ w_qkv + jnp.concatenate(
        [b_q, b_k, jnp.zeros((1, H), jnp.float32)], axis=1)  # fold embedding bias   (1, 3H)
    b_o_eff = b_v @ w_o + b_o                                # V bias routed through W_o

    # ---- bf16 matrix slab (MXU operands only; rows 16-aligned) ----
    mat = jnp.zeros((MAT_ROWS, 128), jnp.bfloat16)

    def put_mat(slab, row, w):
        r, c = w.shape
        return slab.at[row:row + r, 0:c].set(w.astype(jnp.bfloat16))

    mat = put_mat(mat, MR_FF1, w1)
    mat = put_mat(mat, MR_FF2, w2)
    mat = put_mat(mat, MR_D, w_d)
    mat = put_mat(mat, MR_C, w_c)

    # ---- f32 vector slab (one parameter per row) ----
    vec = jnp.zeros((VEC_ROWS, 128), jnp.float32)

    def put_vec(slab, row, v):
        v = v.reshape(1, -1)
        return slab.at[row:row + 1, 0:v.shape[1]].set(v)

    for row, v in ((VR_EMB_W, w_emb), (VR_EMB_B, b_emb),
                   (VR_QKV_W, qkv_w_row), (VR_QKV_B, qkv_b_row),
                   (VR_O_B, b_o_eff),
                   (VR_LN1G, ln1g), (VR_LN1B, ln1b),
                   (VR_FF1_B, b1), (VR_FF2_B, b2),
                   (VR_LN2G, ln2g), (VR_LN2B, ln2b),
                   (VR_LM_W, w_lm), (VR_LM_B, b_lm),
                   (VR_D_B, b_d), (VR_C_B, b_c)):
        vec = put_vec(vec, row, v)

    return mat, vec


if __name__ == "__main__":
    key = jax.random.PRNGKey(0)
    k_x, k_sig, k_cls, k_param = jax.random.split(key, 4)

    x = jax.random.normal(k_x, (B, S), dtype=jnp.float32)           # raw time series
    signal_y = jax.random.normal(k_sig, (B, S), dtype=jnp.float32)  # ts_model labels
    attention = jnp.ones((B, S), dtype=jnp.float32)                 # attention mask
    attention = attention.at[:, S - 2:].set(0.0)                    # pad last 2 steps
    class_y = jax.random.randint(k_cls, (B,), 0, L, dtype=jnp.int32)

    # CLS pooling reads position 0 — assert it is never a padded key.
    assert bool(jnp.all(attention[:, 0] == 1.0))

    mat_slab, vec_slab = init_params(k_param)

    logits, loss = time_series_model_forward(
        x, signal_y, attention, class_y, mat_slab, vec_slab)
    jax.block_until_ready((logits, loss))

    assert logits.shape == (B, L)
    assert bool(jnp.isfinite(loss))
    print("KERNEL_OK")
</pallas_src>

<mosaic_0001>
module attributes {stable_mosaic.version = 11 : i64} {
  func.func @ts_kernel(%arg0: memref<16x1xf32, #tpu.memory_space<vmem>>, %arg1: memref<16x1xf32, #tpu.memory_space<vmem>>, %arg2: memref<1x16xf32, #tpu.memory_space<vmem>>, %arg3: memref<2xi32, #tpu.memory_space<smem>>, %arg4: memref<160x128xbf16, #tpu.memory_space<vmem>>, %arg5: memref<16x128xf32, #tpu.memory_space<vmem>>, %arg6: memref<8x128xf32, #tpu.memory_space<vmem>>) attributes {dimension_semantics = [], scalar_prefetch = 0 : i64, scratch_operands = 0 : i64, tpu.core_type = #tpu.core_type<tc>} {
    %c0 = arith.constant 0 : index
    %c0_0 = arith.constant 0 : index
    %0 = vector.load %arg0[%c0, %c0_0] : memref<16x1xf32, #tpu.memory_space<vmem>>, vector<16x1xf32>
    %c0_1 = arith.constant 0 : index
    %c0_2 = arith.constant 0 : index
    %1 = vector.load %arg1[%c0_1, %c0_2] : memref<16x1xf32, #tpu.memory_space<vmem>>, vector<16x1xf32>
    %c0_3 = arith.constant 0 : index
    %c0_4 = arith.constant 0 : index
    %2 = vector.load %arg2[%c0_3, %c0_4] : memref<1x16xf32, #tpu.memory_space<vmem>>, vector<1x16xf32>
    %c0_5 = arith.constant 0 : index
    %c0_6 = arith.constant 0 : index
    %3 = vector.load %arg5[%c0_5, %c0_6] : memref<16x128xf32, #tpu.memory_space<vmem>>, vector<1x32xf32>
    %c1 = arith.constant 1 : index
    %c0_7 = arith.constant 0 : index
    %4 = vector.load %arg5[%c1, %c0_7] : memref<16x128xf32, #tpu.memory_space<vmem>>, vector<1x32xf32>
    %5 = vector.broadcast %0 : vector<16x1xf32> to vector<16x32xf32>
    %6 = vector.broadcast %3 : vector<1x32xf32> to vector<16x32xf32>
    %7 = arith.mulf %5, %6 : vector<16x32xf32>
    %8 = vector.broadcast %4 : vector<1x32xf32> to vector<16x32xf32>
    %9 = arith.addf %7, %8 : vector<16x32xf32>
    %c2 = arith.constant 2 : index
    %c0_8 = arith.constant 0 : index
    %10 = vector.load %arg5[%c2, %c0_8] : memref<16x128xf32, #tpu.memory_space<vmem>>, vector<1x96xf32>
    %c3 = arith.constant 3 : index
    %c0_9 = arith.constant 0 : index
    %11 = vector.load %arg5[%c3, %c0_9] : memref<16x128xf32, #tpu.memory_space<vmem>>, vector<1x96xf32>
    %12 = vector.broadcast %0 : vector<16x1xf32> to vector<16x96xf32>
    %13 = vector.broadcast %10 : vector<1x96xf32> to vector<16x96xf32>
    %14 = arith.mulf %12, %13 : vector<16x96xf32>
    %15 = vector.broadcast %11 : vector<1x96xf32> to vector<16x96xf32>
    %16 = arith.addf %14, %15 : vector<16x96xf32>
    %17 = vector.extract_strided_slice %16 {offsets = [0, 0], sizes = [16, 32], strides = [1, 1]} : vector<16x96xf32> to vector<16x32xf32>
    %18 = vector.extract_strided_slice %16 {offsets = [0, 32], sizes = [16, 32], strides = [1, 1]} : vector<16x96xf32> to vector<16x32xf32>
    %19 = vector.extract_strided_slice %16 {offsets = [0, 64], sizes = [16, 32], strides = [1, 1]} : vector<16x96xf32> to vector<16x32xf32>
    %20 = arith.truncf %17 : vector<16x32xf32> to vector<16x32xbf16>
    %21 = arith.truncf %18 : vector<16x32xf32> to vector<16x32xbf16>
    %cst = arith.constant dense<0.000000e+00> : vector<16x16xf32>
    %22 = tpu.matmul %20, %21, %cst {dimension_numbers = #tpu.dot_dimension_numbers<[1], [1], [0], [0], [0, 0, 1, 0], [], []>} : vector<16x32xbf16>, vector<16x32xbf16>, vector<16x16xf32> -> vector<16x16xf32>
    %cst_10 = arith.constant 0.176776692 : f32
    %23 = vector.broadcast %cst_10 : f32 to vector<16x16xf32>
    %24 = arith.mulf %22, %23 : vector<16x16xf32>
    %25 = tpu.iota {dimensions = array<i32: 0>} : vector<16x16xi32>
    %26 = tpu.iota {dimensions = array<i32: 1>} : vector<16x16xi32>
    %c3_i32 = arith.constant 3 : i32
    %27 = vector.broadcast %c3_i32 : i32 to vector<16x16xi32>
    %28 = arith.shrsi %25, %27 : vector<16x16xi32>
    %c3_i32_11 = arith.constant 3 : i32
    %29 = vector.broadcast %c3_i32_11 : i32 to vector<16x16xi32>
    %30 = arith.shrsi %26, %29 : vector<16x16xi32>
    %31 = arith.cmpi eq, %28, %30 : vector<16x16xi32>
    %cst_12 = arith.constant 5.000000e-01 : f32
    %32 = vector.broadcast %cst_12 : f32 to vector<1x16xf32>
    %33 = arith.cmpf ogt, %2, %32 : vector<1x16xf32>
    %34 = vector.broadcast %33 : vector<1x16xi1> to vector<16x16xi1>
    %35 = arith.andi %31, %34 : vector<16x16xi1>
    %cst_13 = arith.constant -1.000000e+09 : f32
    %36 = vector.broadcast %cst_13 : f32 to vector<16x16xf32>
    %37 = arith.select %35, %24, %36 : vector<16x16xi1>, vector<16x16xf32>
    %cst_14 = arith.constant dense<0xFF800000> : vector<16xf32>
    %38 = vector.multi_reduction <maximumf>, %37, %cst_14 [1] : vector<16x16xf32> to vector<16xf32>
    %39 = vector.shape_cast %38 : vector<16xf32> to vector<16x1xf32>
    %40 = vector.broadcast %39 : vector<16x1xf32> to vector<16x16xf32>
    %41 = arith.subf %37, %40 : vector<16x16xf32>
    %42 = math.exp %41 : vector<16x16xf32>
    %cst_15 = arith.constant dense<0.000000e+00> : vector<16xf32>
    %43 = vector.multi_reduction <add>, %42, %cst_15 [1] : vector<16x16xf32> to vector<16xf32>
    %44 = vector.shape_cast %43 : vector<16xf32> to vector<16x1xf32>
    %45 = tpu.reciprocal %44 {approx = true} : vector<16x1xf32> -> vector<16x1xf32>
    %46 = vector.broadcast %45 : vector<16x1xf32> to vector<16x16xf32>
    %47 = arith.mulf %42, %46 : vector<16x16xf32>
    %c4 = arith.constant 4 : index
    %c0_16 = arith.constant 0 : index
    %48 = vector.load %arg5[%c4, %c0_16] : memref<16x128xf32, #tpu.memory_space<vmem>>, vector<1x32xf32>
    %49 = arith.truncf %47 : vector<16x16xf32> to vector<16x16xbf16>
    %50 = arith.truncf %19 : vector<16x32xf32> to vector<16x32xbf16>
    %cst_17 = arith.constant dense<0.000000e+00> : vector<16x32xf32>
    %51 = tpu.matmul %49, %50, %cst_17 {dimension_numbers = #tpu.dot_dimension_numbers<[1], [0], [0], [1], [0, 0, 1, 1], [], []>} : vector<16x16xbf16>, vector<16x32xbf16>, vector<16x32xf32> -> vector<16x32xf32>
    %52 = vector.broadcast %48 : vector<1x32xf32> to vector<16x32xf32>
    %53 = arith.addf %51, %52 : vector<16x32xf32>
    %54 = arith.addf %9, %53 : vector<16x32xf32>
    %c5 = arith.constant 5 : index
    %c0_18 = arith.constant 0 : index
    %55 = vector.load %arg5[%c5, %c0_18] : memref<16x128xf32, #tpu.memory_space<vmem>>, vector<1x32xf32>
    %c6 = arith.constant 6 : index
    %c0_19 = arith.constant 0 : index
    %56 = vector.load %arg5[%c6, %c0_19] : memref<16x128xf32, #tpu.memory_space<vmem>>, vector<1x32xf32>
    %cst_20 = arith.constant dense<0.000000e+00> : vector<16xf32>
    %57 = vector.multi_reduction <add>, %54, %cst_20 [1] : vector<16x32xf32> to vector<16xf32>
    %58 = vector.shape_cast %57 : vector<16xf32> to vector<16x1xf32>
    %cst_21 = arith.constant 3.200000e+01 : f32
    %59 = vector.broadcast %cst_21 : f32 to vector<16x1xf32>
    %60 = arith.divf %58, %59 : vector<16x1xf32>
    %61 = vector.broadcast %60 : vector<16x1xf32> to vector<16x32xf32>
    %62 = arith.subf %54, %61 : vector<16x32xf32>
    %63 = arith.mulf %62, %62 : vector<16x32xf32>
    %cst_22 = arith.constant dense<0.000000e+00> : vector<16xf32>
    %64 = vector.multi_reduction <add>, %63, %cst_22 [1] : vector<16x32xf32> to vector<16xf32>
    %65 = vector.shape_cast %64 : vector<16xf32> to vector<16x1xf32>
    %cst_23 = arith.constant 3.200000e+01 : f32
    %66 = vector.broadcast %cst_23 : f32 to vector<16x1xf32>
    %67 = arith.divf %65, %66 : vector<16x1xf32>
    %68 = vector.broadcast %60 : vector<16x1xf32> to vector<16x32xf32>
    %69 = arith.subf %54, %68 : vector<16x32xf32>
    %cst_24 = arith.constant 9.99999974E-6 : f32
    %70 = vector.broadcast %cst_24 : f32 to vector<16x1xf32>
    %71 = arith.addf %67, %70 : vector<16x1xf32>
    %72 = math.rsqrt %71 : vector<16x1xf32>
    %73 = vector.broadcast %72 : vector<16x1xf32> to vector<16x32xf32>
    %74 = arith.mulf %69, %73 : vector<16x32xf32>
    %75 = vector.broadcast %55 : vector<1x32xf32> to vector<16x32xf32>
    %76 = arith.mulf %74, %75 : vector<16x32xf32>
    %77 = vector.broadcast %56 : vector<1x32xf32> to vector<16x32xf32>
    %78 = arith.addf %76, %77 : vector<16x32xf32>
    %c0_25 = arith.constant 0 : index
    %c0_26 = arith.constant 0 : index
    %79 = vector.load %arg4[%c0_25, %c0_26] : memref<160x128xbf16, #tpu.memory_space<vmem>>, vector<32x64xbf16>
    %c7 = arith.constant 7 : index
    %c0_27 = arith.constant 0 : index
    %80 = vector.load %arg5[%c7, %c0_27] : memref<16x128xf32, #tpu.memory_space<vmem>>, vector<1x64xf32>
    %c32 = arith.constant 32 : index
    %c0_28 = arith.constant 0 : index
    %81 = vector.load %arg4[%c32, %c0_28] : memref<160x128xbf16, #tpu.memory_space<vmem>>, vector<64x32xbf16>
    %c8 = arith.constant 8 : index
    %c0_29 = arith.constant 0 : index
    %82 = vector.load %arg5[%c8, %c0_29] : memref<16x128xf32, #tpu.memory_space<vmem>>, vector<1x32xf32>
    %83 = arith.truncf %78 : vector<16x32xf32> to vector<16x32xbf16>
    %cst_30 = arith.constant dense<0.000000e+00> : vector<16x64xf32>
    %84 = tpu.matmul %83, %79, %cst_30 {dimension_numbers = #tpu.dot_dimension_numbers<[1], [0], [0], [1], [0, 0, 1, 1], [], []>} : vector<16x32xbf16>, vector<32x64xbf16>, vector<16x64xf32> -> vector<16x64xf32>
    %85 = vector.broadcast %80 : vector<1x64xf32> to vector<16x64xf32>
    %86 = arith.addf %84, %85 : vector<16x64xf32>
    %cst_31 = arith.constant 5.000000e-01 : f32
    %87 = vector.broadcast %cst_31 : f32 to vector<16x64xf32>
    %88 = arith.mulf %87, %86 : vector<16x64xf32>
    %89 = arith.mulf %86, %86 : vector<16x64xf32>
    %90 = arith.mulf %89, %86 : vector<16x64xf32>
    %cst_32 = arith.constant 4.471500e-02 : f32
    %91 = vector.broadcast %cst_32 : f32 to vector<16x64xf32>
    %92 = arith.mulf %91, %90 : vector<16x64xf32>
    %93 = arith.addf %86, %92 : vector<16x64xf32>
    %cst_33 = arith.constant 0.797884583 : f32
    %94 = vector.broadcast %cst_33 : f32 to vector<16x64xf32>
    %95 = arith.mulf %94, %93 : vector<16x64xf32>
    %96 = math.tanh %95 : vector<16x64xf32>
    %cst_34 = arith.constant 1.000000e+00 : f32
    %97 = vector.broadcast %cst_34 : f32 to vector<16x64xf32>
    %98 = arith.addf %97, %96 : vector<16x64xf32>
    %99 = arith.mulf %88, %98 : vector<16x64xf32>
    %100 = arith.truncf %99 : vector<16x64xf32> to vector<16x64xbf16>
    %cst_35 = arith.constant dense<0.000000e+00> : vector<16x32xf32>
    %101 = tpu.matmul %100, %81, %cst_35 {dimension_numbers = #tpu.dot_dimension_numbers<[1], [0], [0], [1], [0, 0, 1, 1], [], []>} : vector<16x64xbf16>, vector<64x32xbf16>, vector<16x32xf32> -> vector<16x32xf32>
    %102 = vector.broadcast %82 : vector<1x32xf32> to vector<16x32xf32>
    %103 = arith.addf %101, %102 : vector<16x32xf32>
    %104 = arith.addf %78, %103 : vector<16x32xf32>
    %c9 = arith.constant 9 : index
    %c0_36 = arith.constant 0 : index
    %105 = vector.load %arg5[%c9, %c0_36] : memref<16x128xf32, #tpu.memory_space<vmem>>, vector<1x32xf32>
    %c10 = arith.constant 10 : index
    %c0_37 = arith.constant 0 : index
    %106 = vector.load %arg5[%c10, %c0_37] : memref<16x128xf32, #tpu.memory_space<vmem>>, vector<1x32xf32>
    %cst_38 = arith.constant dense<0.000000e+00> : vector<16xf32>
    %107 = vector.multi_reduction <add>, %104, %cst_38 [1] : vector<16x32xf32> to vector<16xf32>
    %108 = vector.shape_cast %107 : vector<16xf32> to vector<16x1xf32>
    %cst_39 = arith.constant 3.200000e+01 : f32
    %109 = vector.broadcast %cst_39 : f32 to vector<16x1xf32>
    %110 = arith.divf %108, %109 : vector<16x1xf32>
    %111 = vector.broadcast %110 : vector<16x1xf32> to vector<16x32xf32>
    %112 = arith.subf %104, %111 : vector<16x32xf32>
    %113 = arith.mulf %112, %112 : vector<16x32xf32>
    %cst_40 = arith.constant dense<0.000000e+00> : vector<16xf32>
    %114 = vector.multi_reduction <add>, %113, %cst_40 [1] : vector<16x32xf32> to vector<16xf32>
    %115 = vector.shape_cast %114 : vector<16xf32> to vector<16x1xf32>
    %cst_41 = arith.constant 3.200000e+01 : f32
    %116 = vector.broadcast %cst_41 : f32 to vector<16x1xf32>
    %117 = arith.divf %115, %116 : vector<16x1xf32>
    %118 = vector.broadcast %110 : vector<16x1xf32> to vector<16x32xf32>
    %119 = arith.subf %104, %118 : vector<16x32xf32>
    %cst_42 = arith.constant 9.99999974E-6 : f32
    %120 = vector.broadcast %cst_42 : f32 to vector<16x1xf32>
    %121 = arith.addf %117, %120 : vector<16x1xf32>
    %122 = math.rsqrt %121 : vector<16x1xf32>
    %123 = vector.broadcast %122 : vector<16x1xf32> to vector<16x32xf32>
    %124 = arith.mulf %119, %123 : vector<16x32xf32>
    %125 = vector.broadcast %105 : vector<1x32xf32> to vector<16x32xf32>
    %126 = arith.mulf %124, %125 : vector<16x32xf32>
    %127 = vector.broadcast %106 : vector<1x32xf32> to vector<16x32xf32>
    %128 = arith.addf %126, %127 : vector<16x32xf32>
    %c11 = arith.constant 11 : index
    %c0_43 = arith.constant 0 : index
    %129 = vector.load %arg5[%c11, %c0_43] : memref<16x128xf32, #tpu.memory_space<vmem>>, vector<1x32xf32>
    %c12 = arith.constant 12 : index
    %c0_44 = arith.constant 0 : index
    %130 = vector.load %arg5[%c12, %c0_44] : memref<16x128xf32, #tpu.memory_space<vmem>>, vector<1x1xf32>
    %131 = vector.broadcast %129 : vector<1x32xf32> to vector<16x32xf32>
    %132 = arith.mulf %128, %131 : vector<16x32xf32>
    %cst_45 = arith.constant dense<0.000000e+00> : vector<16xf32>
    %133 = vector.multi_reduction <add>, %132, %cst_45 [1] : vector<16x32xf32> to vector<16xf32>
    %134 = vector.shape_cast %133 : vector<16xf32> to vector<16x1xf32>
    %135 = vector.broadcast %130 : vector<1x1xf32> to vector<16x1xf32>
    %136 = arith.addf %134, %135 : vector<16x1xf32>
    %137 = arith.subf %136, %1 : vector<16x1xf32>
    %138 = arith.mulf %137, %137 : vector<16x1xf32>
    %139 = arith.cmpi eq, %25, %26 : vector<16x16xi32>
    %140 = vector.broadcast %138 : vector<16x1xf32> to vector<16x16xf32>
    %141 = vector.broadcast %2 : vector<1x16xf32> to vector<16x16xf32>
    %142 = arith.mulf %140, %141 : vector<16x16xf32>
    %cst_46 = arith.constant 0.000000e+00 : f32
    %143 = vector.broadcast %cst_46 : f32 to vector<16x16xf32>
    %144 = arith.select %139, %142, %143 : vector<16x16xi1>, vector<16x16xf32>
    %145 = vector.shape_cast %144 : vector<16x16xf32> to vector<1x16x16xf32>
    %cst_47 = arith.constant dense<0.000000e+00> : vector<1xf32>
    %146 = vector.multi_reduction <add>, %145, %cst_47 [1, 2] : vector<1x16x16xf32> to vector<1xf32>
    %147 = vector.shape_cast %146 : vector<1xf32> to vector<1x1x1xf32>
    %148 = vector.extract %147[0, 0, 0] : f32 from vector<1x1x1xf32>
    %149 = vector.broadcast %148 : f32 to vector<1x1xf32>
    %150 = vector.shape_cast %2 : vector<1x16xf32> to vector<1x1x16xf32>
    %cst_48 = arith.constant dense<0.000000e+00> : vector<1xf32>
    %151 = vector.multi_reduction <add>, %150, %cst_48 [1, 2] : vector<1x1x16xf32> to vector<1xf32>
    %152 = vector.shape_cast %151 : vector<1xf32> to vector<1x1x1xf32>
    %153 = vector.extract %152[0, 0, 0] : f32 from vector<1x1x1xf32>
    %154 = vector.broadcast %153 : f32 to vector<1x1xf32>
    %cst_49 = arith.constant 1.000000e+00 : f32
    %155 = vector.broadcast %cst_49 : f32 to vector<1x1xf32>
    %156 = arith.maximumf %154, %155 : vector<1x1xf32>
    %157 = tpu.reciprocal %156 {approx = true} : vector<1x1xf32> -> vector<1x1xf32>
    %158 = arith.mulf %149, %157 : vector<1x1xf32>
    %c96 = arith.constant 96 : index
    %c0_50 = arith.constant 0 : index
    %159 = vector.load %arg4[%c96, %c0_50] : memref<160x128xbf16, #tpu.memory_space<vmem>>, vector<32x32xbf16>
    %c13 = arith.constant 13 : index
    %c0_51 = arith.constant 0 : index
    %160 = vector.load %arg5[%c13, %c0_51] : memref<16x128xf32, #tpu.memory_space<vmem>>, vector<1x32xf32>
    %c128 = arith.constant 128 : index
    %c0_52 = arith.constant 0 : index
    %161 = vector.load %arg4[%c128, %c0_52] : memref<160x128xbf16, #tpu.memory_space<vmem>>, vector<32x4xbf16>
    %c14 = arith.constant 14 : index
    %c0_53 = arith.constant 0 : index
    %162 = vector.load %arg5[%c14, %c0_53] : memref<16x128xf32, #tpu.memory_space<vmem>>, vector<1x4xf32>
    %163 = arith.truncf %128 : vector<16x32xf32> to vector<16x32xbf16>
    %cst_54 = arith.constant dense<0.000000e+00> : vector<16x32xf32>
    %164 = tpu.matmul %163, %159, %cst_54 {dimension_numbers = #tpu.dot_dimension_numbers<[1], [0], [0], [1], [0, 0, 1, 1], [], []>} : vector<16x32xbf16>, vector<32x32xbf16>, vector<16x32xf32> -> vector<16x32xf32>
    %165 = vector.broadcast %160 : vector<1x32xf32> to vector<16x32xf32>
    %166 = arith.addf %164, %165 : vector<16x32xf32>
    %cst_55 = arith.constant 5.000000e-01 : f32
    %167 = vector.broadcast %cst_55 : f32 to vector<16x32xf32>
    %168 = arith.mulf %167, %166 : vector<16x32xf32>
    %169 = arith.mulf %166, %166 : vector<16x32xf32>
    %170 = arith.mulf %169, %166 : vector<16x32xf32>
    %cst_56 = arith.constant 4.471500e-02 : f32
    %171 = vector.broadcast %cst_56 : f32 to vector<16x32xf32>
    %172 = arith.mulf %171, %170 : vector<16x32xf32>
    %173 = arith.addf %166, %172 : vector<16x32xf32>
    %cst_57 = arith.constant 0.797884583 : f32
    %174 = vector.broadcast %cst_57 : f32 to vector<16x32xf32>
    %175 = arith.mulf %174, %173 : vector<16x32xf32>
    %176 = math.tanh %175 : vector<16x32xf32>
    %cst_58 = arith.constant 1.000000e+00 : f32
    %177 = vector.broadcast %cst_58 : f32 to vector<16x32xf32>
    %178 = arith.addf %177, %176 : vector<16x32xf32>
    %179 = arith.mulf %168, %178 : vector<16x32xf32>
    %180 = arith.truncf %179 : vector<16x32xf32> to vector<16x32xbf16>
    %cst_59 = arith.constant dense<0.000000e+00> : vector<16x4xf32>
    %181 = tpu.matmul %180, %161, %cst_59 {dimension_numbers = #tpu.dot_dimension_numbers<[1], [0], [0], [1], [0, 0, 1, 1], [], []>} : vector<16x32xbf16>, vector<32x4xbf16>, vector<16x4xf32> -> vector<16x4xf32>
    %182 = vector.broadcast %162 : vector<1x4xf32> to vector<16x4xf32>
    %183 = arith.addf %181, %182 : vector<16x4xf32>
    %184 = vector.extract_strided_slice %183 {offsets = [0, 0], sizes = [1, 4], strides = [1, 1]} : vector<16x4xf32> to vector<1x4xf32>
    %185 = vector.extract_strided_slice %183 {offsets = [8, 0], sizes = [1, 4], strides = [1, 1]} : vector<16x4xf32> to vector<1x4xf32>
    %186 = tpu.iota {dimensions = array<i32: 0>} : vector<2x4xi32>
    %c0_i32 = arith.constant 0 : i32
    %187 = vector.broadcast %c0_i32 : i32 to vector<2x4xi32>
    %188 = arith.cmpi eq, %186, %187 : vector<2x4xi32>
    %189 = vector.shape_cast %184 : vector<1x4xf32> to vector<1x4xf32>
    %190 = vector.broadcast %189 : vector<1x4xf32> to vector<2x4xf32>
    %191 = vector.shape_cast %185 : vector<1x4xf32> to vector<1x4xf32>
    %192 = vector.broadcast %191 : vector<1x4xf32> to vector<2x4xf32>
    %193 = arith.select %188, %190, %192 : vector<2x4xi1>, vector<2x4xf32>
    %194 = tpu.iota {dimensions = array<i32: 1>} : vector<2x4xi32>
    %c0_i32_60 = arith.constant 0 : i32
    %195 = vector.broadcast %c0_i32_60 : i32 to vector<2x4xi32>
    %196 = arith.cmpi eq, %186, %195 : vector<2x4xi32>
    %c0_61 = arith.constant 0 : index
    %197 = memref.load %arg3[%c0_61] : memref<2xi32, #tpu.memory_space<smem>>
    %c1_62 = arith.constant 1 : index
    %198 = memref.load %arg3[%c1_62] : memref<2xi32, #tpu.memory_space<smem>>
    %199 = vector.broadcast %197 : i32 to vector<2x4xi32>
    %200 = vector.broadcast %198 : i32 to vector<2x4xi32>
    %201 = arith.select %196, %199, %200 : vector<2x4xi1>, vector<2x4xi32>
    %202 = arith.cmpi eq, %194, %201 : vector<2x4xi32>
    %cst_63 = arith.constant dense<0xFF800000> : vector<2xf32>
    %203 = vector.multi_reduction <maximumf>, %193, %cst_63 [1] : vector<2x4xf32> to vector<2xf32>
    %204 = vector.shape_cast %203 : vector<2xf32> to vector<2x1xf32>
    %205 = vector.broadcast %204 : vector<2x1xf32> to vector<2x4xf32>
    %206 = arith.subf %193, %205 : vector<2x4xf32>
    %207 = math.exp %206 : vector<2x4xf32>
    %cst_64 = arith.constant dense<0.000000e+00> : vector<2xf32>
    %208 = vector.multi_reduction <add>, %207, %cst_64 [1] : vector<2x4xf32> to vector<2xf32>
    %209 = vector.shape_cast %208 : vector<2xf32> to vector<2x1xf32>
    %210 = math.log %209 : vector<2x1xf32>
    %211 = arith.addf %204, %210 : vector<2x1xf32>
    %cst_65 = arith.constant 0.000000e+00 : f32
    %212 = vector.broadcast %cst_65 : f32 to vector<2x4xf32>
    %213 = arith.select %202, %193, %212 : vector<2x4xi1>, vector<2x4xf32>
    %cst_66 = arith.constant dense<0.000000e+00> : vector<2xf32>
    %214 = vector.multi_reduction <add>, %213, %cst_66 [1] : vector<2x4xf32> to vector<2xf32>
    %215 = vector.shape_cast %214 : vector<2xf32> to vector<2x1xf32>
    %216 = arith.subf %211, %215 : vector<2x1xf32>
    %217 = vector.shape_cast %216 : vector<2x1xf32> to vector<1x2x1xf32>
    %cst_67 = arith.constant dense<0.000000e+00> : vector<1xf32>
    %218 = vector.multi_reduction <add>, %217, %cst_67 [1, 2] : vector<1x2x1xf32> to vector<1xf32>
    %219 = vector.shape_cast %218 : vector<1xf32> to vector<1x1x1xf32>
    %220 = vector.extract %219[0, 0, 0] : f32 from vector<1x1x1xf32>
    %221 = vector.broadcast %220 : f32 to vector<1x1xf32>
    %cst_68 = arith.constant 5.000000e-01 : f32
    %222 = vector.broadcast %cst_68 : f32 to vector<1x1xf32>
    %223 = arith.mulf %221, %222 : vector<1x1xf32>
    %cst_69 = arith.constant 0.000000e+00 : f32
    %224 = vector.broadcast %cst_69 : f32 to vector<8x128xf32>
    %c0_70 = arith.constant 0 : index
    %c0_71 = arith.constant 0 : index
    %225 = vector.load %arg6[%c0_70, %c0_71] : memref<8x128xf32, #tpu.memory_space<vmem>>, vector<8x128xf32>
    tpu.vector_store %arg6[%c0_70, %c0_71], %224 {strides = array<i32>} : memref<8x128xf32, #tpu.memory_space<vmem>>, vector<8x128xf32>,
    %c0_72 = arith.constant 0 : index
    %c0_73 = arith.constant 0 : index
    %226 = vector.load %arg6[%c0_72, %c0_73] : memref<8x128xf32, #tpu.memory_space<vmem>>, vector<2x4xf32>
    tpu.vector_store %arg6[%c0_72, %c0_73], %193 {strides = array<i32>} : memref<8x128xf32, #tpu.memory_space<vmem>>, vector<2x4xf32>,
    %227 = arith.addf %158, %223 : vector<1x1xf32>
    %c2_74 = arith.constant 2 : index
    %c0_75 = arith.constant 0 : index
    %228 = vector.load %arg6[%c2_74, %c0_75] : memref<8x128xf32, #tpu.memory_space<vmem>>, vector<1x1xf32>
    tpu.vector_store %arg6[%c2_74, %c0_75], %227 {strides = array<i32>} : memref<8x128xf32, #tpu.memory_space<vmem>>, vector<1x1xf32>,
    return
  }
}

</mosaic_0001>

<llo_original>
// kernel: time_series_model_forward.1
$region0: #{time_series_model_forward.1}
  #allocation0 [shape = 'u32[]', space=smem, size = 0x4, offset = 0x4, fixed_abs, tag = 'smem constant byte address 0x4 - core index']
  #allocation1 [shape = 'u32[72,128]{1,0:T(1,128)}', space=vmem, size = 0x9000, scoped, tag = 'internal scratch']
  %s0 = inlined_call_operand.vmem [shape: f32[16,1], index: 0, kind: input, shape index: {}]
  %s1 = inlined_call_operand.vmem [shape: f32[16,1], index: 1, kind: input, shape index: {}]
  %s2 = inlined_call_operand.vmem [shape: f32[1,16], index: 2, kind: input, shape index: {}]
  %s3 = inlined_call_operand.vmem [shape: s32[2], index: 3, kind: input, shape index: {}]
  %s4 = inlined_call_operand.hbm [shape: bf16[160,128], index: 4, kind: input, shape index: {}]
  %s5 = inlined_call_operand.vmem [shape: f32[16,128], index: 5, kind: input, shape index: {}]
  %s6 = inlined_call_operand.vmem [shape: f32[8,128], index: 6, kind: output, shape index: {}]
  %s7 = sld [smem:[#allocation0]]
  $region42: #{time_series_model_forward.1} parent=0
    _
  %s9 = ssub.s32 1, %s7
  %s10 = scalar_select 0, %s9, %s7
  $region1: #{time_series_model_forward.1} parent=0
    #allocation2 [shape = 'u8[512]{0}', space=smem, size = 0x200, scoped, tag = 'input window, operand 3, single buffered']
    #allocation3 [shape = 's32[1]{0}', space=sflag, size = 0x4, scoped, tag = 'scoped memory for time_series_model_forward.1']
    #allocation4 [shape = 's32[1]{0}', space=sflag, size = 0x4, scoped, tag = 'scoped memory for time_series_model_forward.1']
    #allocation5 [shape = 'u8[40960]{0}', space=vmem, size = 0xa000, scoped, tag = 'input window, operand 4, single buffered']
    %11 = vsyncpa [#allocation4], 0
    %12 = vsyncpa [#allocation3], 0
    // Predicated region
    $region2: #{time_series_model_forward.1} parent=1 // pred_check
      _
    $region3: #{time_series_model_forward.1} parent=1 // pred_check_branch
      %14 = sbr.rel (0) target = $region5
    $region4: #{time_series_model_forward.1} parent=1 // pred_region
      _
    $region5: #{time_series_model_forward.1} parent=1 // pred_fallthru
      _
    // Predicated region
    $region6: #{time_series_model_forward.1} parent=1 // pred_check
      _
    $region7: #{time_series_model_forward.1} parent=1 // pred_check_branch
      %16 = sbr.rel (0) target = $region9
    $region8: #{time_series_model_forward.1} parent=1 // pred_region
      _
    $region9: #{time_series_model_forward.1} parent=1 // pred_fallthru
      _
    // Predicated region
    $region10: #{time_series_model_forward.1} parent=1 // pred_check
      _
    $region11: #{time_series_model_forward.1} parent=1 // pred_check_branch
      %18 = sbr.rel (0) target = $region13
    $region12: #{time_series_model_forward.1} parent=1 // pred_region
      _
    $region13: #{time_series_model_forward.1} parent=1 // pred_fallthru
      _
    // Predicated region
    $region14: #{time_series_model_forward.1} parent=1 // pred_check
      _
    $region15: #{time_series_model_forward.1} parent=1 // pred_check_branch
      %20 = sbr.rel (0) target = $region17
    $region16: #{time_series_model_forward.1} parent=1 // pred_region
      %22 = vsyncadd [#allocation4], 0
      %s24 = sshll.u32 %s3, 4
      %s25 = int_to_ptr.vmem [resolvable:$true] %s24
      %27 = dma.vmem_to_smem %s25, 16, [#allocation2], [#allocation4]
    $region17: #{time_series_model_forward.1} parent=1 // pred_fallthru
      _
    // Predicated region
    $region18: #{time_series_model_forward.1} parent=1 // pred_check
      _
    $region19: #{time_series_model_forward.1} parent=1 // pred_check_branch
      %29 = sbr.rel (0) target = $region21
    $region20: #{time_series_model_forward.1} parent=1 // pred_region
      %31 = vsyncadd [#allocation3], 0
      %s32 = sshll.u32 %s4, 4
      %s33 = int_to_ptr.hbm [resolvable:$true] %s32
      %s34 = sshll.u32 [#allocation5], 4
      %s35 = int_to_ptr.vmem [resolvable:$true] %s34
      %40 = dma.hbm_to_vmem [thread:$0]  %s33, 1280, %s35, [#allocation3], 64, 64, 4
    $region21: #{time_series_model_forward.1} parent=1 // pred_fallthru
      _
    // Predicated region
    $region22: #{time_series_model_forward.1} parent=1 // pred_check
      _
    $region23: #{time_series_model_forward.1} parent=1 // pred_check_branch
      %42 = sbr.rel (0) target = $region25
    $region24: #{time_series_model_forward.1} parent=1 // pred_region
      _
    $region25: #{time_series_model_forward.1} parent=1 // pred_fallthru
      _
    // Predicated region
    $region26: #{time_series_model_forward.1} parent=1 // pred_check
      _
    $region27: #{time_series_model_forward.1} parent=1 // pred_check_branch
      %44 = sbr.rel (0) target = $region29
    $region28: #{time_series_model_forward.1} parent=1 // pred_region
      %46 = dma.done [#allocation4], 16
    $region29: #{time_series_model_forward.1} parent=1 // pred_fallthru
      _
    // Predicated region
    $region30: #{time_series_model_forward.1} parent=1 // pred_check
      _
    $region31: #{time_series_model_forward.1} parent=1 // pred_check_branch
      %48 = sbr.rel (0) target = $region33
    $region32: #{time_series_model_forward.1} parent=1 // pred_region
      %50 = dma.done [#allocation3], 1280
    $region33: #{time_series_model_forward.1} parent=1 // pred_fallthru
      _
    %51 = sfence
    %v53 = vld [vmem:[%s0] sm:$0xff]
    %v54 = vld [vmem:[%s0 + $0x8] sm:$0xff]
    %v55 = vld [vmem:[%s1] sm:$0xff]
    %v56 = vld [vmem:[%s1 + $0x8] sm:$0xff]
    %v57 = vld [vmem:[%s2] sm:$0x1]
    %v58 = vld [vmem:[%s5] sm:$0x1]
    %v59 = vld [vmem:[%s5 + $0x1] sm:$0x1]
    %61 = vset.pattern.permute.xlu0 0
    %62 = vperm.xlu0 %61, %v53
    %v63 = vpop.permute.xlu0 %62
    %66 = vset.pattern.permute.xlu0 0
    %67 = vperm.xlu0 %66, %v54
    %v68 = vpop.permute.xlu0 %67
    %v70 = vperm.slane %v58, 0
    %v71 = vmul.f32 %v63, %v70
    %v72 = vmul.f32 %v68, %v70
    %v73 = vperm.slane %v59, 0
    %v74 = vadd.f32 %v71, %v73
    %v75 = vadd.f32 %v72, %v73
    %v76 = vld [vmem:[%s5 + $0x2] sm:$0x1]
    %v77 = vld [vmem:[%s5 + $0x3] sm:$0x1]
    %v78 = vperm.slane %v76, 0
    %v79 = vmul.f32 %v63, %v78
    %v80 = vmul.f32 %v68, %v78
    %v81 = vperm.slane %v77, 0
    %v82 = vadd.f32 %v79, %v81
    %v83 = vadd.f32 %v80, %v81
    %v84 = vpack.c.bf16 %v83, %v82
    %86 = vrot.lane.b32.xlu0 %v84, 96
    %v87 = vpop.permute.xlu0 %86
    %vm88 = vcmask 261120
    %v90 = vsel %vm88, %v84, 0
    %v93 = vsel %vm88, %v87, 0
    %95 = vmatpush.bf16.xpose.msra.mxu0 0
    %96 = vmatpush.bf16.xpose.msra.mxu0 0
    %97 = vmatpush.bf16.xpose.msra.mxu0 0
    %98 = vmatpush.bf16.xpose.msra.mxu0 0
    %99 = vmatpush.bf16.xpose.msra.mxu0 0
    %100 = vmatpush.bf16.xpose.msra.mxu0 0
    %101 = vmatpush.bf16.xpose.msra.mxu0 0
    %102 = vmatpush.bf16.xpose.msra.mxu0 %v93
    %103 = vmatmul.bf16.gmra.mxu0 %v90
    %v104 = vpop.f32.mrf.mxu0
    %v105 = vadd.f32 0.0, %v104
    %v106 = vpop.f32.mrf.mxu0
    %v107 = vadd.f32 0.0, %v106
    %108 = vdwg.mxu0
    %v109 = vmul.f32 %v105, 0.17677669
    %v110 = vmul.f32 %v107, 0.17677669
    %v111 = vlaneseq
    %v112 = vshrl.u32 %v111, 7
    %v113 = vadd.s32 %v112, 8
    %v114 = vlaneseq
    %v115 = vand.u32 %v114, 127
    %v116 = vshra.s32 %v112, 3
    %v117 = vshra.s32 %v113, 3
    %v118 = vshra.s32 %v115, 3
    %vm119 = vcmp.eq.s32.totalorder %v116, %v118
    %vm120 = vcmp.eq.s32.totalorder %v117, %v118
    %vm121 = vcmp.gt.f32.partialorder %v57, 0.5
    %v122 = vsel %vm121, 1, 0
    %v123 = vperm.slane %v122, 0
    %vm124 = vcmp.eq.s32.totalorder %v123, 1
    %vm125 = vmand %vm119, %vm124
    %vm126 = vmand %vm120, %vm124
    %v127 = vsel %vm125, %v109, -1e+09
    %v128 = vsel %vm126, %v110, -1e+09
    %vm129 = vcmask 130048
    %v130 = vsel %vm129, %v127, -inf
    %131 = vmax.xlane.f32.xlu0 %v130
    %v132 = vpop.xlane.xlu0 %131
    %v133 = vsel %vm129, %v128, -inf
    %134 = vmax.xlane.f32.xlu0 %v133
    %v135 = vpop.xlane.xlu0 %134
    %v136 = vsub.f32 %v127, %v132
    %v137 = vsub.f32 %v128, %v135
    %v138 = vmul.f32 %v136, 1.442695
    %v139 = vpow.pop %v138
    %v140 = vmul.f32 %v137, 1.442695
    %v141 = vpow.pop %v140
    %v142 = vsel %vm129, %v139, 0.0
    %143 = vadd.xlane.f32.xlu0 %v142
    %v144 = vpop.xlane.xlu0 %143
    %v145 = vsel %vm129, %v141, 0.0
    %146 = vadd.xlane.f32.xlu0 %v145
    %v147 = vpop.xlane.xlu0 %146
    %v148 = vrcp.pop %v144
    %v149 = vrcp.pop %v147
    %v150 = vmul.f32 %v139, %v148
    %v151 = vmul.f32 %v141, %v149
    %v152 = vld [vmem:[%s5 + $0x4] sm:$0x1]
    %v153 = vpack.c.bf16 %v151, %v150
    %v154 = vperm.slane %v152, 0
    %155 = vrot.lane.b32.xlu0 %v84, 64
    %v156 = vpop.permute.xlu0 %155
    %v159 = vsel %vm129, %v153, 0
    %161 = vmatpush.bf16.msra.mxu0 0
    %162 = vmatpush.bf16.msra.mxu0 0
    %163 = vmatpush.bf16.msra.mxu0 0
    %164 = vmatpush.bf16.msra.mxu0 0
    %165 = vmatpush.bf16.msra.mxu0 0
    %166 = vmatpush.bf16.msra.mxu0 0
    %167 = vmatpush.bf16.msra.mxu0 0
    %168 = vmatpush.bf16.msra.mxu0 %v156
    %169 = vmatmul.bf16.gmra.mxu0 %v159
    %v170 = vpop.f32.mrf.mxu0
    %v171 = vadd.f32 %v154, %v170
    %v172 = vpop.f32.mrf.mxu0
    %v173 = vadd.f32 %v154, %v172
    %174 = vdwg.mxu0
    %v175 = vadd.f32 %v74, %v171
    %v176 = vadd.f32 %v75, %v173
    %v177 = vld [vmem:[%s5 + $0x5] sm:$0x1]
    %v178 = vld [vmem:[%s5 + $0x6] sm:$0x1]
    %v179 = vsel %vm88, %v175, 0.0
    %180 = vadd.xlane.f32.xlu0 %v179
    %v181 = vpop.xlane.xlu0 %180
    %v182 = vsel %vm88, %v176, 0.0
    %183 = vadd.xlane.f32.xlu0 %v182
    %v184 = vpop.xlane.xlu0 %183
    %v185 = vrcp.pop 32.0
    %v186 = vmul.f32 32.0, %v185
    %v187 = vsub.f32 1.0, %v186
    %v188 = vmul.f32 %v185, %v187
    %v189 = vadd.f32 %v185, %v188
    %vm190 = vweird.f32 %v185
    %v191 = vsel %vm190, %v185, %v189
    %v192 = vmul.f32 %v181, %v191
    %v193 = vmul.f32 %v184, %v191
    %v194 = vsub.f32 %v175, %v192
    %v195 = vsub.f32 %v176, %v193
    %v196 = vmul.f32 %v194, %v194
    %v197 = vmul.f32 %v195, %v195
    %v198 = vsel %vm88, %v196, 0.0
    %199 = vadd.xlane.f32.xlu0 %v198
    %v200 = vpop.xlane.xlu0 %199
    %v201 = vsel %vm88, %v197, 0.0
    %202 = vadd.xlane.f32.xlu0 %v201
    %v203 = vpop.xlane.xlu0 %202
    %v204 = vmul.f32 %v200, %v191
    %v205 = vmul.f32 %v203, %v191
    %v206 = vadd.f32 %v204, 1e-05
    %v207 = vadd.f32 %v205, 1e-05
    %v208 = vrsqrt.pop %v206
    %v209 = vmul.f32 %v208, %v206
    %v210 = vmul.f32 %v209, %v208
    %v211 = vmul.f32 0.5, %v210
    %v212 = vsub.f32 1.5, %v211
    %v213 = vmul.f32 %v208, %v212
    %vm214 = vweird.f32 %v206
    %vm215 = vweird.f32 %v208
    %vm216 = vmor %vm214, %vm215
    %v217 = vsel %vm216, %v208, %v213
    %v218 = vrsqrt.pop %v207
    %v219 = vmul.f32 %v218, %v207
    %v220 = vmul.f32 %v219, %v218
    %v221 = vmul.f32 0.5, %v220
    %v222 = vsub.f32 1.5, %v221
    %v223 = vmul.f32 %v218, %v222
    %vm224 = vweird.f32 %v207
    %vm225 = vweird.f32 %v218
    %vm226 = vmor %vm224, %vm225
    %v227 = vsel %vm226, %v218, %v223
    %v228 = vmul.f32 %v194, %v217
    %v229 = vmul.f32 %v195, %v227
    %v230 = vperm.slane %v177, 0
    %v231 = vmul.f32 %v228, %v230
    %v232 = vmul.f32 %v229, %v230
    %v233 = vperm.slane %v178, 0
    %v234 = vadd.f32 %v231, %v233
    %v235 = vadd.f32 %v232, %v233
    %v236 = vld [vmem:[#allocation5] sm:$0xf]
    %v237 = vld [vmem:[#allocation5 + $0x4] sm:$0xf]
    %v238 = vld [vmem:[#allocation5 + $0x8] sm:$0xf]
    %v239 = vld [vmem:[#allocation5 + $0xc] sm:$0xf]
    %v240 = vld [vmem:[%s5 + $0x7] sm:$0x1]
    %v241 = vld [vmem:[#allocation5 + $0x10] sm:$0xf]
    %v242 = vld [vmem:[#allocation5 + $0x14] sm:$0xf]
    %v243 = vld [vmem:[#allocation5 + $0x18] sm:$0xf]
    %v244 = vld [vmem:[#allocation5 + $0x1c] sm:$0xf]
    %v245 = vld [vmem:[#allocation5 + $0x20] sm:$0xf]
    %v246 = vld [vmem:[#allocation5 + $0x24] sm:$0xf]
    %v247 = vld [vmem:[#allocation5 + $0x28] sm:$0xf]
    %v248 = vld [vmem:[#allocation5 + $0x2c] sm:$0xf]
    %v249 = vld [vmem:[%s5 + $0x8] sm:$0x1]
    %v250 = vpack.c.bf16 %v235, %v234
    %v251 = vperm.slane %v240, 0
    %v256 = vunpack.c.l.b16 %v236
    %v257 = vunpack.c.l.b16 %v237
    %v258 = vunpack.c.l.b16 %v238
    %v259 = vunpack.c.l.b16 %v239
    %v260 = vpack.c.b16 %v257, %v256
    %v261 = vpack.c.b16 %v259, %v258
    %v265 = vsel %vm88, %v250, 0
    %267 = vmatpush.bf16.msra.mxu0 0
    %268 = vmatpush.bf16.msra.mxu0 0
    %269 = vmatpush.bf16.msra.mxu0 0
    %270 = vmatpush.bf16.msra.mxu0 0
    %271 = vmatpush.bf16.msra.mxu0 0
    %272 = vmatpush.bf16.msra.mxu0 0
    %273 = vmatpush.bf16.msra.mxu0 %v261
    %274 = vmatpush.bf16.msra.mxu0 %v260
    %275 = vmatmul.bf16.gmra.mxu0 %v265
    %v276 = vpop.f32.mrf.mxu0
    %v277 = vadd.f32 %v251, %v276
    %v278 = vpop.f32.mrf.mxu0
    %v279 = vadd.f32 %v251, %v278
    %280 = vdwg.mxu0
    %v281 = vmul.f32 %v277, 0.5
    %v282 = vmul.f32 %v279, 0.5
    %v283 = vmul.f32 %v277, %v277
    %v284 = vmul.f32 %v279, %v279
    %v285 = vmul.f32 %v283, %v277
    %v286 = vmul.f32 %v284, %v279
    %v287 = vmul.f32 %v285, 0.044715
    %v288 = vmul.f32 %v286, 0.044715
    %v289 = vadd.f32 %v277, %v287
    %v290 = vadd.f32 %v279, %v288
    %v291 = vmul.f32 %v289, 0.7978846
    %v292 = vmul.f32 %v290, 0.7978846
    %v293 = vtanh.pop %v291
    %v294 = vtanh.pop %v292
    %v295 = vadd.f32 %v293, 1.0
    %v296 = vadd.f32 %v294, 1.0
    %v297 = vmul.f32 %v281, %v295
    %v298 = vmul.f32 %v282, %v296
    %v299 = vpack.c.bf16 %v298, %v297
    %v300 = vperm.slane %v249, 0
    %v309 = vunpack.c.l.b16 %v241
    %v310 = vunpack.c.l.b16 %v242
    %v311 = vunpack.c.l.b16 %v243
    %v312 = vunpack.c.l.b16 %v244
    %v313 = vunpack.c.l.b16 %v245
    %v314 = vunpack.c.l.b16 %v246
    %v315 = vunpack.c.l.b16 %v247
    %v316 = vunpack.c.l.b16 %v248
    %v317 = vpack.c.b16 %v310, %v309
    %v318 = vpack.c.b16 %v312, %v311
    %v319 = vpack.c.b16 %v314, %v313
    %v320 = vpack.c.b16 %v316, %v315
    %vm325 = vcmask 523264
    %v327 = vsel %vm325, %v299, 0
    %329 = vmatpush.bf16.msra.mxu0 0
    %330 = vmatpush.bf16.msra.mxu0 0
    %331 = vmatpush.bf16.msra.mxu0 0
    %332 = vmatpush.bf16.msra.mxu0 0
    %333 = vmatpush.bf16.msra.mxu0 %v320
    %334 = vmatpush.bf16.msra.mxu0 %v319
    %335 = vmatpush.bf16.msra.mxu0 %v318
    %336 = vmatpush.bf16.msra.mxu0 %v317
    %337 = vmatmul.bf16.gmra.mxu0 %v327
    %v338 = vpop.f32.mrf.mxu0
    %v339 = vadd.f32 %v300, %v338
    %v340 = vpop.f32.mrf.mxu0
    %v341 = vadd.f32 %v300, %v340
    %342 = vdwg.mxu0
    %v343 = vadd.f32 %v234, %v339
    %v344 = vadd.f32 %v235, %v341
    %v345 = vld [vmem:[%s5 + $0x9] sm:$0x1]
    %v346 = vld [vmem:[%s5 + $0xa] sm:$0x1]
    %v347 = vsel %vm88, %v343, 0.0
    %348 = vadd.xlane.f32.xlu0 %v347
    %v349 = vpop.xlane.xlu0 %348
    %v350 = vsel %vm88, %v344, 0.0
    %351 = vadd.xlane.f32.xlu0 %v350
    %v352 = vpop.xlane.xlu0 %351
    %v353 = vmul.f32 %v349, %v191
    %v354 = vmul.f32 %v352, %v191
    %v355 = vsub.f32 %v343, %v353
    %v356 = vsub.f32 %v344, %v354
    %v357 = vmul.f32 %v355, %v355
    %v358 = vmul.f32 %v356, %v356
    %v359 = vsel %vm88, %v357, 0.0
    %360 = vadd.xlane.f32.xlu0 %v359
    %v361 = vpop.xlane.xlu0 %360
    %v362 = vsel %vm88, %v358, 0.0
    %363 = vadd.xlane.f32.xlu0 %v362
    %v364 = vpop.xlane.xlu0 %363
    %v365 = vmul.f32 %v361, %v191
    %v366 = vmul.f32 %v364, %v191
    %v367 = vadd.f32 %v365, 1e-05
    %v368 = vadd.f32 %v366, 1e-05
    %v369 = vrsqrt.pop %v367
    %v370 = vmul.f32 %v369, %v367
    %v371 = vmul.f32 %v370, %v369
    %v372 = vmul.f32 0.5, %v371
    %v373 = vsub.f32 1.5, %v372
    %v374 = vmul.f32 %v369, %v373
    %vm375 = vweird.f32 %v367
    %vm376 = vweird.f32 %v369
    %vm377 = vmor %vm375, %vm376
    %v378 = vsel %vm377, %v369, %v374
    %v379 = vrsqrt.pop %v368
    %v380 = vmul.f32 %v379, %v368
    %v381 = vmul.f32 %v380, %v379
    %v382 = vmul.f32 0.5, %v381
    %v383 = vsub.f32 1.5, %v382
    %v384 = vmul.f32 %v379, %v383
    %vm385 = vweird.f32 %v368
    %vm386 = vweird.f32 %v379
    %vm387 = vmor %vm385, %vm386
    %v388 = vsel %vm387, %v379, %v384
    %v389 = vmul.f32 %v355, %v378
    %v390 = vmul.f32 %v356, %v388
    %v391 = vperm.slane %v345, 0
    %v392 = vmul.f32 %v389, %v391
    %v393 = vmul.f32 %v390, %v391
    %v394 = vperm.slane %v346, 0
    %v395 = vadd.f32 %v392, %v394
    %v396 = vadd.f32 %v393, %v394
    %v397 = vld [vmem:[%s5 + $0xb] sm:$0x1]
    %v398 = vld [vmem:[%s5 + $0xc] sm:$0x1]
    %v399 = vperm.slane %v397, 0
    %v400 = vmul.f32 %v395, %v399
    %v401 = vmul.f32 %v396, %v399
    %v402 = vsel %vm88, %v400, 0.0
    %403 = vadd.xlane.f32.xlu0 %v402
    %v404 = vpop.xlane.xlu0 %403
    %v405 = vsel %vm88, %v401, 0.0
    %406 = vadd.xlane.f32.xlu0 %v405
    %v407 = vpop.xlane.xlu0 %406
    %v408 = vperm.slane %v398, 0
    %v409 = vadd.f32 %v404, %v408
    %v410 = vadd.f32 %v407, %v408
    %v411 = vsub.f32 %v409, %v55
    %v412 = vsub.f32 %v410, %v56
    %v413 = vmul.f32 %v411, %v411
    %v414 = vmul.f32 %v412, %v412
    %vm415 = vcmp.eq.s32.totalorder %v112, %v115
    %vm416 = vcmp.eq.s32.totalorder %v113, %v115
    %418 = vset.pattern.permute.xlu0 0
    %419 = vperm.xlu0 %418, %v413
    %v420 = vpop.permute.xlu0 %419
    %423 = vset.pattern.permute.xlu0 0
    %424 = vperm.xlu0 %423, %v414
    %v425 = vpop.permute.xlu0 %424
    %v428 = vperm.slane %v57, 0
    %v430 = vmul.f32 %v420, %v428
    %v431 = vmul.f32 %v425, %v428
    %v432 = vsel %vm415, %v430, 0.0
    %v433 = vsel %vm416, %v431, 0.0
    %v434 = vsel %vm129, %v432, 0.0
    %v435 = vsel %vm129, %v433, 0.0
    %v436 = vadd.f32 %v434, %v435
    %437 = vadd.xlane.f32.xlu0 %v436
    %v438 = vpop.xlane.xlu0 %437
    %v439 = vrot.slane %v438, 4
    %v440 = vadd.f32 %v438, %v439
    %v441 = vrot.slane %v440, 2
    %v442 = vadd.f32 %v440, %v441
    %v443 = vrot.slane %v442, 1
    %v444 = vadd.f32 %v442, %v443
    %s445 = vtos %v444
    %v446 = vstv %s445
    %vm447 = vcmask 122880
    %v448 = vsel %vm447, %v57, 0.0
    %449 = vadd.xlane.f32.xlu0 %v448
    %v450 = vpop.xlane.xlu0 %449
    %v451 = vrot.slane %v450, 4
    %v452 = vadd.f32 %v450, %v451
    %v453 = vrot.slane %v452, 2
    %v454 = vadd.f32 %v452, %v453
    %v455 = vrot.slane %v454, 1
    %v456 = vadd.f32 %v454, %v455
    %s457 = vtos %v456
    %v458 = vstv %s457
    %v459 = vmax.f32 %v458, 1.0
    %v460 = vrcp.pop %v459
    %v461 = vmul.f32 %v446, %v460
    %v462 = vld [vmem:[#allocation5 + $0x30] sm:$0xf]
    %v463 = vld [vmem:[#allocation5 + $0x34] sm:$0xf]
    %v464 = vld [vmem:[#allocation5 + $0x38] sm:$0xf]
    %v465 = vld [vmem:[#allocation5 + $0x3c] sm:$0xf]
    %v466 = vld [vmem:[%s5 + $0xd] sm:$0x1]
    %v467 = vld [vmem:[#allocation5 + $0x40] sm:$0xf]
    %v468 = vld [vmem:[#allocation5 + $0x44] sm:$0xf]
    %v469 = vld [vmem:[#allocation5 + $0x48] sm:$0xf]
    %v470 = vld [vmem:[#allocation5 + $0x4c] sm:$0xf]
    %v471 = vld [vmem:[%s5 + $0xe] sm:$0x1]
    %v472 = vpack.c.bf16 %v396, %v395
    %v473 = vperm.slane %v466, 0
    %v478 = vunpack.c.l.b16 %v462
    %v479 = vunpack.c.l.b16 %v463
    %v480 = vunpack.c.l.b16 %v464
    %v481 = vunpack.c.l.b16 %v465
    %v482 = vpack.c.b16 %v479, %v478
    %v483 = vpack.c.b16 %v481, %v480
    %v487 = vsel %vm88, %v472, 0
    %489 = vmatpush.bf16.msra.mxu0 0
    %490 = vmatpush.bf16.msra.mxu0 0
    %491 = vmatpush.bf16.msra.mxu0 0
    %492 = vmatpush.bf16.msra.mxu0 0
    %493 = vmatpush.bf16.msra.mxu0 0
    %494 = vmatpush.bf16.msra.mxu0 0
    %495 = vmatpush.bf16.msra.mxu0 %v483
    %496 = vmatpush.bf16.msra.mxu0 %v482
    %497 = vmatmul.bf16.gmra.mxu0 %v487
    %v498 = vpop.f32.mrf.mxu0
    %v499 = vadd.f32 %v473, %v498
    %v500 = vpop.f32.mrf.mxu0
    %v501 = vadd.f32 %v473, %v500
    %502 = vdwg.mxu0
    %v503 = vmul.f32 %v499, 0.5
    %v504 = vmul.f32 %v501, 0.5
    %v505 = vmul.f32 %v499, %v499
    %v506 = vmul.f32 %v501, %v501
    %v507 = vmul.f32 %v505, %v499
    %v508 = vmul.f32 %v506, %v501
    %v509 = vmul.f32 %v507, 0.044715
    %v510 = vmul.f32 %v508, 0.044715
    %v511 = vadd.f32 %v499, %v509
    %v512 = vadd.f32 %v501, %v510
    %v513 = vmul.f32 %v511, 0.7978846
    %v514 = vmul.f32 %v512, 0.7978846
    %v515 = vtanh.pop %v513
    %v516 = vtanh.pop %v514
    %v517 = vadd.f32 %v515, 1.0
    %v518 = vadd.f32 %v516, 1.0
    %v519 = vmul.f32 %v503, %v517
    %v520 = vmul.f32 %v504, %v518
    %v521 = vpack.c.bf16 %v520, %v519
    %v522 = vperm.slane %v471, 0
    %v527 = vunpack.c.l.b16 %v467
    %v528 = vunpack.c.l.b16 %v468
    %v529 = vunpack.c.l.b16 %v469
    %v530 = vunpack.c.l.b16 %v470
    %v531 = vpack.c.b16 %v528, %v527
    %v532 = vpack.c.b16 %v530, %v529
    %v536 = vsel %vm88, %v521, 0
    %538 = vmatpush.bf16.msra.mxu0 0
    %539 = vmatpush.bf16.msra.mxu0 0
    %540 = vmatpush.bf16.msra.mxu0 0
    %541 = vmatpush.bf16.msra.mxu0 0
    %542 = vmatpush.bf16.msra.mxu0 0
    %543 = vmatpush.bf16.msra.mxu0 0
    %544 = vmatpush.bf16.msra.mxu0 %v532
    %545 = vmatpush.bf16.msra.mxu0 %v531
    %546 = vmatmul.bf16.gmra.mxu0 %v536
    %v547 = vpop.f32.mrf.mxu0
    %v548 = vadd.f32 %v522, %v547
    %v549 = vpop.f32.mrf.mxu0
    %v550 = vadd.f32 %v522, %v549
    %551 = vdwg.mxu0
    %vm552 = vcmp.eq.s32.totalorder %v112, 0
    %v553 = vperm.slane %v548, 0
    %v554 = vperm.slane %v550, 0
    %v555 = vsel %vm552, %v553, %v554
    %s556 = sld [smem:[#allocation2]]
    %s557 = sld [smem:[#allocation2 + $0x1]]
    %v558 = vstv %s556
    %v559 = vstv %s557
    %v560 = vsel %vm552, %v558, %v559
    %vm561 = vcmp.eq.s32.totalorder %v115, %v560
    %vm562 = vcmask 25600
    %v563 = vsel %vm562, %v555, -inf
    %564 = vmax.xlane.f32.xlu0 %v563
    %v565 = vpop.xlane.xlu0 %564
    %v566 = vsub.f32 %v555, %v565
    %v567 = vmul.f32 %v566, 1.442695
    %v568 = vpow.pop %v567
    %v569 = vsel %vm562, %v568, 0.0
    %570 = vadd.xlane.f32.xlu0 %v569
    %v571 = vpop.xlane.xlu0 %570
    %v572 = vlog2.pop %v571
    %v573 = vmul.f32 %v572, 0.6931472
    %v574 = vadd.f32 %v565, %v573
    %v575 = vsel %vm561, %v555, 0.0
    %v576 = vsel %vm562, %v575, 0.0
    %577 = vadd.xlane.f32.xlu0 %v576
    %v578 = vpop.xlane.xlu0 %577
    %v579 = vsub.f32 %v574, %v578
    %vm580 = vcmask 1024
    %v581 = vsel %vm580, %v579, 0.0
    %582 = vadd.xlane.f32.xlu0 %v581
    %v583 = vpop.xlane.xlu0 %582
    %v584 = vrot.slane %v583, 4
    %v585 = vadd.f32 %v583, %v584
    %v586 = vrot.slane %v585, 2
    %v587 = vadd.f32 %v585, %v586
    %v588 = vrot.slane %v587, 1
    %v589 = vadd.f32 %v587, %v588
    %s590 = vtos %v589
    %v591 = vstv %s590
    %v592 = vmul.f32 %v591, 0.5
    %593 = vst [vmem:[%s6] sm:$0xff] 0.0
    %594 = vst.msk [vmem:[%s6] sm:$0x3] %vm562, %v555
    %v595 = vadd.f32 %v461, %v592
    %vm596 = vcmask 0
    %597 = vst.msk [vmem:[%s6 + $0x2] sm:$0x1] %vm596, %v595
    // Predicated region
    $region34: #{time_series_model_forward.1} parent=1 // pred_check
      _
    $region35: #{time_series_model_forward.1} parent=1 // pred_check_branch
      %599 = sbr.rel (0) target = $region37
    $region36: #{time_series_model_forward.1} parent=1 // pred_region
      _
    $region37: #{time_series_model_forward.1} parent=1 // pred_fallthru
      _
    // Predicated region
    $region38: #{time_series_model_forward.1} parent=1 // pred_check
      _
    $region39: #{time_series_model_forward.1} parent=1 // pred_check_branch
      %601 = sbr.rel (0) target = $region41
    $region40: #{time_series_model_forward.1} parent=1 // pred_region
      _
    $region41: #{time_series_model_forward.1} parent=1 // pred_fallthru
      _
    %602 = vsyncpa [#allocation3], 1
    %603 = vsyncpa [#allocation4], 1

</llo_original>
